<compile_context>
chip_gen: v7x
topology: tpu7x:2x2x1
jax: 0.10.0
libtpu: 0.0.40
codegen_flags: <defaults>
</compile_context>

<pallas_src>
import math
import functools

import jax
import jax.numpy as jnp
from jax.experimental import pallas as pl
from jax.experimental.pallas import tpu as pltpu


def _round_up(a, b):
    return (a + b - 1) // b * b


# ---------------------------------------------------------------------------
# Pallas kernel: fused (x @ W_eff) + shift -> activation
# ---------------------------------------------------------------------------
def _fc_kernel(x_ref, w_ref, shift_ref, out_ref, *, activation, cout):
    # x_ref: (tm, K) bf16, w_ref: (K, Cp) bf16, shift_ref: (1, Cp) f32
    y = jnp.dot(x_ref[...], w_ref[...], preferred_element_type=jnp.float32)
    y = y + shift_ref[...]
    if activation == "relu":
        y = jnp.maximum(y, 0.0)
    elif activation == "sigmoid":
        y = 1.0 / (1.0 + jnp.exp(-y))          # exp lowers to EUP (free slot)
    elif activation == "softmax":
        # Mask padded lanes so they do not contribute to the softmax.
        col = jax.lax.broadcasted_iota(jnp.int32, y.shape, 1)
        y = jnp.where(col < cout, y, -1e30)
        m = jnp.max(y, axis=-1, keepdims=True)
        p = jnp.exp(y - m)
        y = p / jnp.sum(p, axis=-1, keepdims=True)
    # activation is None ('global') -> identity
    out_ref[...] = y.astype(out_ref.dtype)


def _choose_tm(M, K, Cp):
    """Pick a row-tile size that fits a conservative VMEM budget on all gens.

    Budget per grid step (double-buffered input/output tiles + resident W):
      2 * tm*K*2 (bf16 x) + 2 * tm*Cp*4 (f32 out) + K*Cp*2 + Cp*4  <= budget
    16 MiB is safely under the default scoped VMEM limit on v5e/v6e/v7x.
    """
    budget = 16 * 1024 * 1024
    fixed = K * Cp * 2 + Cp * 4
    per_row = 2 * K * 2 + 2 * Cp * 4
    tm_cap = max(8, (budget - fixed) // max(per_row, 1))
    tm = min(512, tm_cap, _round_up(M, 8))
    return max(8, (tm // 8) * 8)


def _fused_fc(x2, w_mat, shift, *, activation, cout, tm):
    Mp, K = x2.shape
    Cp = w_mat.shape[1]
    grid = (Mp // tm,)

    kernel = functools.partial(_fc_kernel, activation=activation, cout=cout)

    flops = 2 * Mp * K * Cp
    transc = Mp * Cp if activation in ("sigmoid", "softmax") else 0
    bytes_accessed = Mp * K * 2 + K * Cp * 2 + Cp * 4 + Mp * Cp * 4

    return pl.pallas_call(
        kernel,
        out_shape=jax.ShapeDtypeStruct((Mp, Cp), jnp.float32),
        grid_spec=pltpu.PrefetchScalarGridSpec(
            num_scalar_prefetch=0,
            grid=grid,
            in_specs=[
                pl.BlockSpec((tm, K), lambda i: (i, 0)),   # pipelined row tile
                pl.BlockSpec((K, Cp), lambda i: (0, 0)),   # resident weight
                pl.BlockSpec((1, Cp), lambda i: (0, 0)),   # fused bias + BN shift
            ],
            out_specs=pl.BlockSpec((tm, Cp), lambda i: (i, 0)),
        ),
        compiler_params=pltpu.CompilerParams(
            dimension_semantics=("parallel",),
            vmem_limit_bytes=32 * 1024 * 1024,
        ),
        cost_estimate=pl.CostEstimate(
            flops=flops, transcendentals=transc, bytes_accessed=bytes_accessed),
    )(x2, w_mat, shift)


# ---------------------------------------------------------------------------
# FullyConnected wrapper (param init, BN/WN folding, padding — glue only)
# ---------------------------------------------------------------------------
class FullyConnectedPallas:
    def __init__(self, in_channels, out_channels, activation, normalisation,
                 att=None, *, key):
        self.in_channels = in_channels
        self.out_channels = out_channels
        self.att = att
        self.norm = normalisation

        # Mirror the PyTorch constructor's activation/normalisation resolution.
        if activation == "sigmoid":
            self.act = "sigmoid"
            self.norm = None
        elif activation == "softmax":
            self.act = "softmax"
            self.norm = None
        elif activation == "global":
            self.act = None
            self.norm = None
        else:
            self.act = "relu"

        # Weight init.
        if att:
            # init_att_layer: weight = 1, bias = 0
            self.weight = jnp.ones((out_channels, in_channels), jnp.float32)
        else:
            # init_layer: He-uniform
            n = in_channels
            std = math.sqrt(2.0 / n)
            scale = std * math.sqrt(3.0)
            self.weight = jax.random.uniform(
                key, (out_channels, in_channels),
                minval=-scale, maxval=scale, dtype=jnp.float32)
        self.bias = jnp.zeros((out_channels,), jnp.float32)

        if self.norm == "bn":
            # init_bn: gamma=1, beta=0; fresh running stats mean=0, var=1
            self.bn_gamma = jnp.ones((out_channels,), jnp.float32)
            self.bn_beta = jnp.zeros((out_channels,), jnp.float32)
            self.bn_mean = jnp.zeros((out_channels,), jnp.float32)
            self.bn_var = jnp.ones((out_channels,), jnp.float32)
            self.bn_eps = 1e-5
        elif self.norm == "wn":
            # weight_norm reparam: w = g * v / ||v||, g initialised to ||v||
            self.wn_v = self.weight
            self.wn_g = jnp.sqrt(jnp.sum(self.weight ** 2, axis=1))

    def effective_weight(self):
        if self.norm == "wn":
            vnorm = jnp.sqrt(jnp.sum(self.wn_v ** 2, axis=1, keepdims=True))
            return self.wn_g[:, None] * self.wn_v / vnorm
        return self.weight

    def __call__(self, x):
        # x: (..., in_channels); leading dims are flattened into the row dim.
        K = x.shape[-1]
        lead = x.shape[:-1]
        x2 = x.reshape(-1, K)
        M = x2.shape[0]
        Cout = self.out_channels

        # --- fold eval-mode BN (scale/shift) into the GEMM operands ---
        w = self.effective_weight()              # (Cout, K)
        shift = self.bias
        if self.norm == "bn":
            bn_scale = self.bn_gamma / jnp.sqrt(self.bn_var + self.bn_eps)
            bn_shift = self.bn_beta - self.bn_mean * bn_scale
            w = w * bn_scale[:, None]
            shift = shift * bn_scale + bn_shift

        w_mat = w.T                              # (K, Cout)

        # Lane-dense output: pad out_features to a multiple of 128.
        Cp = _round_up(Cout, 128)
        if Cp != Cout:
            w_mat = jnp.pad(w_mat, ((0, 0), (0, Cp - Cout)))
            shift = jnp.pad(shift, (0, Cp - Cout))
        shift = shift.reshape(1, Cp).astype(jnp.float32)

        # Row tiling: tm multiple of 8, VMEM-budgeted; pad M to a multiple.
        tm = _choose_tm(M, K, Cp)
        Mp = _round_up(M, tm)
        if Mp != M:
            x2 = jnp.pad(x2, ((0, Mp - M), (0, 0)))

        out = _fused_fc(
            x2.astype(jnp.bfloat16),
            w_mat.astype(jnp.bfloat16),
            shift,
            activation=self.act,
            cout=Cout,
            tm=tm,
        )
        out = out[:M, :Cout]
        return out.reshape(*lead, Cout)


# ---------------------------------------------------------------------------
# Pure-JAX reference for correctness check
# ---------------------------------------------------------------------------
def _reference(fc, x):
    w = fc.effective_weight()
    y = jnp.einsum("...k,ck->...c", x, w) + fc.bias
    if fc.norm == "bn":
        scale = fc.bn_gamma / jnp.sqrt(fc.bn_var + fc.bn_eps)
        shift = fc.bn_beta - fc.bn_mean * scale
        y = y * scale + shift
    if fc.act == "relu":
        y = jnp.maximum(y, 0.0)
    elif fc.act == "sigmoid":
        y = jax.nn.sigmoid(y)
    elif fc.act == "softmax":
        y = jax.nn.softmax(y, axis=-1)
    return y


if __name__ == "__main__":
    key = jax.random.PRNGKey(0)

    # (x_shape, out_channels, activation, normalisation, att)
    configs = [
        ((16, 32), 16, "relu", "bn", None),      # main path: fc -> BN -> ReLU
        ((2, 8, 32), 1, "sigmoid", None, None),  # sigmoid head, 3-D input
        ((16, 32), 4, "softmax", None, None),    # softmax head (masked pad lanes)
        ((16, 32), 16, "global", None, None),    # linear only
        ((16, 32), 16, "relu", "wn", None),      # weight-norm path
        ((2, 8, 32), 1, "relu", None, 1),        # attention init (w=1, b=0)
    ]

    for i, (xshape, cout, act, norm, att) in enumerate(configs):
        k_w, k_x = jax.random.split(jax.random.fold_in(key, i))
        cin = xshape[-1]
        fc = FullyConnectedPallas(cin, cout, act, norm, att=att, key=k_w)
        x = jax.random.normal(k_x, xshape, dtype=jnp.float32)

        out = jax.block_until_ready(fc(x))
        ref = _reference(fc, x)

        assert out.shape == ref.shape, (act, out.shape, ref.shape)
        # bf16 MXU operands with f32 accumulation -> loosened tolerance
        assert jnp.allclose(out, ref, atol=2e-2, rtol=2e-2), f"mismatch: {act}"

    print("KERNEL_OK")
</pallas_src>

<mosaic_0001>
module attributes {stable_mosaic.version = 11 : i64} {
  func.func @_fc_kernel(%arg0: i32, %arg1: memref<16x32xbf16, #tpu.memory_space<vmem>>, %arg2: memref<32x128xbf16, #tpu.memory_space<vmem>>, %arg3: memref<1x128xf32, #tpu.memory_space<vmem>>, %arg4: memref<16x128xf32, #tpu.memory_space<vmem>>) attributes {dimension_semantics = [#tpu.dimension_semantics<parallel>], iteration_bounds = array<i64: 1>, scalar_prefetch = 0 : i64, scratch_operands = 0 : i64, tpu.core_type = #tpu.core_type<tc>, window_params = [{transform_indices = @transform_0, window_bounds = array<i64: 16, 32>}, {pipeline_mode = #tpu.pipeline_mode<synchronous>, transform_indices = @transform_1, window_bounds = array<i64: 32, 128>}, {pipeline_mode = #tpu.pipeline_mode<synchronous>, transform_indices = @transform_2, window_bounds = array<i64: 1, 128>}, {transform_indices = @transform_3, window_bounds = array<i64: 16, 128>}]} {
    %c0 = arith.constant 0 : index
    %c0_0 = arith.constant 0 : index
    %0 = vector.load %arg1[%c0, %c0_0] : memref<16x32xbf16, #tpu.memory_space<vmem>>, vector<16x32xbf16>
    %c0_1 = arith.constant 0 : index
    %c0_2 = arith.constant 0 : index
    %1 = vector.load %arg2[%c0_1, %c0_2] : memref<32x128xbf16, #tpu.memory_space<vmem>>, vector<32x128xbf16>
    %cst = arith.constant dense<0.000000e+00> : vector<16x128xf32>
    %2 = tpu.matmul %0, %1, %cst {dimension_numbers = #tpu.dot_dimension_numbers<[1], [0], [0], [1], [0, 0, 1, 1], [], []>} : vector<16x32xbf16>, vector<32x128xbf16>, vector<16x128xf32> -> vector<16x128xf32>
    %c0_3 = arith.constant 0 : index
    %c0_4 = arith.constant 0 : index
    %3 = vector.load %arg3[%c0_3, %c0_4] : memref<1x128xf32, #tpu.memory_space<vmem>>, vector<1x128xf32>
    %4 = vector.broadcast %3 : vector<1x128xf32> to vector<16x128xf32>
    %5 = arith.addf %2, %4 : vector<16x128xf32>
    %cst_5 = arith.constant 0.000000e+00 : f32
    %6 = vector.broadcast %cst_5 : f32 to vector<16x128xf32>
    %7 = arith.maximumf %5, %6 : vector<16x128xf32>
    %c0_6 = arith.constant 0 : index
    %c0_7 = arith.constant 0 : index
    %8 = vector.load %arg4[%c0_6, %c0_7] : memref<16x128xf32, #tpu.memory_space<vmem>>, vector<16x128xf32>
    tpu.vector_store %arg4[%c0_6, %c0_7], %7 {strides = array<i32>} : memref<16x128xf32, #tpu.memory_space<vmem>>, vector<16x128xf32>,
    return
  }
  func.func @transform_0(%arg0: i32) -> (i32, i32) {
    %c0_i32 = arith.constant 0 : i32
    %c0_i32_0 = arith.constant 0 : i32
    return %arg0, %c0_i32 : i32, i32
  }
  func.func @transform_1(%arg0: i32) -> (i32, i32) {
    %c0_i32 = arith.constant 0 : i32
    %c0_i32_0 = arith.constant 0 : i32
    %c0_i32_1 = arith.constant 0 : i32
    return %c0_i32, %c0_i32_0 : i32, i32
  }
  func.func @transform_2(%arg0: i32) -> (i32, i32) {
    %c0_i32 = arith.constant 0 : i32
    %c0_i32_0 = arith.constant 0 : i32
    %c0_i32_1 = arith.constant 0 : i32
    return %c0_i32, %c0_i32_0 : i32, i32
  }
  func.func @transform_3(%arg0: i32) -> (i32, i32) {
    %c0_i32 = arith.constant 0 : i32
    %c0_i32_0 = arith.constant 0 : i32
    return %arg0, %c0_i32 : i32, i32
  }
}

</mosaic_0001>

<llo_original>
// kernel: tpu_custom_call.1
$region0: #{tpu_custom_call.1}
  #allocation0 [shape = 'u32[]', space=smem, size = 0x4, offset = 0x4, fixed_abs, tag = 'smem constant byte address 0x4 - core index']
  #allocation1 [shape = 'u32[144,128]{1,0:T(1,128)}', space=vmem, size = 0x12000, scoped, tag = 'internal scratch']
  %s0 = inlined_call_operand.hbm [shape: bf16[16,32], index: 0, kind: input, shape index: {}]
  %s1 = inlined_call_operand.hbm [shape: bf16[32,128], index: 1, kind: input, shape index: {}]
  %s2 = inlined_call_operand.vmem [shape: f32[1,128], index: 2, kind: input, shape index: {}]
  %s3 = inlined_call_operand.hbm [shape: f32[16,128], index: 3, kind: output, shape index: {}]
  %s4 = sld [smem:[#allocation0]]
  $region30: #{tpu_custom_call.1} parent=0
    _
  %s6 = ssub.s32 1, %s4
  %s7 = scalar_select 0, %s6, %s4
  $region1: #{tpu_custom_call.1} parent=0
    #allocation2 [shape = 'u8[4096]{0}', space=vmem, size = 0x1000, scoped, tag = 'input window, operand 0, single buffered']
    #allocation3 [shape = 's32[1]{0}', space=sflag, size = 0x4, scoped, tag = 'scoped memory for tpu_custom_call.1']
    #allocation4 [shape = 's32[1]{0}', space=sflag, size = 0x4, scoped, tag = 'scoped memory for tpu_custom_call.1']
    #allocation5 [shape = 'u8[8192]{0}', space=vmem, size = 0x2000, scoped, tag = 'input window, operand 1, single buffered']
    #allocation6 [shape = 's32[1]{0}', space=sflag, size = 0x4, scoped, tag = 'scoped memory for tpu_custom_call.1']
    #allocation7 [shape = 'u8[8192]{0}', space=vmem, size = 0x2000, scoped, tag = 'output window, operand 0, single buffered']
    %8 = vsyncpa [#allocation3], 0
    %9 = vsyncpa [#allocation6], 0
    %10 = vsyncpa [#allocation4], 0
    // Predicated region
    $region2: #{tpu_custom_call.1} parent=1 // pred_check
      _
    $region3: #{tpu_custom_call.1} parent=1 // pred_check_branch
      %12 = sbr.rel (0) target = $region5
    $region4: #{tpu_custom_call.1} parent=1 // pred_region
      %s14 = ssub.s32 128, 128
      %15 = vsyncadd [#allocation3], %s14
      %s16 = sshll.u32 [#allocation2], 4
      %s17 = int_to_ptr.vmem [resolvable:$true] %s16
      %22 = dma.hbm_to_vmem [thread:$0]  %s0, 128, %s17, [#allocation3], 64, 64, 4
    $region5: #{tpu_custom_call.1} parent=1 // pred_fallthru
      _
    // Predicated region
    $region6: #{tpu_custom_call.1} parent=1 // pred_check
      _
    $region7: #{tpu_custom_call.1} parent=1 // pred_check_branch
      %24 = sbr.rel (0) target = $region9
    $region8: #{tpu_custom_call.1} parent=1 // pred_region
      %s26 = ssub.s32 256, 256
      %27 = vsyncadd [#allocation6], %s26
      %s28 = sshll.u32 [#allocation5], 4
      %s29 = int_to_ptr.vmem [resolvable:$true] %s28
      %34 = dma.hbm_to_vmem [thread:$0]  %s1, 256, %s29, [#allocation6], 64, 64, 4
    $region9: #{tpu_custom_call.1} parent=1 // pred_fallthru
      _
    // Predicated region
    $region10: #{tpu_custom_call.1} parent=1 // pred_check
      _
    $region11: #{tpu_custom_call.1} parent=1 // pred_check_branch
      %36 = sbr.rel (0) target = $region13
    $region12: #{tpu_custom_call.1} parent=1 // pred_region
      _
    $region13: #{tpu_custom_call.1} parent=1 // pred_fallthru
      _
    // Predicated region
    $region14: #{tpu_custom_call.1} parent=1 // pred_check
      _
    $region15: #{tpu_custom_call.1} parent=1 // pred_check_branch
      %38 = sbr.rel (0) target = $region17
    $region16: #{tpu_custom_call.1} parent=1 // pred_region
      %39 = dma.done [#allocation3], 128
    $region17: #{tpu_custom_call.1} parent=1 // pred_fallthru
      _
    // Predicated region
    $region18: #{tpu_custom_call.1} parent=1 // pred_check
      _
    $region19: #{tpu_custom_call.1} parent=1 // pred_check_branch
      %41 = sbr.rel (0) target = $region21
    $region20: #{tpu_custom_call.1} parent=1 // pred_region
      %42 = dma.done [#allocation6], 256
    $region21: #{tpu_custom_call.1} parent=1 // pred_fallthru
      _
    %v44 = vld [vmem:[#allocation2] sm:$0xf]
    %v45 = vld [vmem:[#allocation2 + $0x4] sm:$0xf]
    %v46 = vld [vmem:[#allocation5] sm:$0xf]
    %v47 = vld [vmem:[#allocation5 + $0x4] sm:$0xf]
    %v48 = vld [vmem:[#allocation5 + $0x8] sm:$0xf]
    %v49 = vld [vmem:[#allocation5 + $0xc] sm:$0xf]
    %v50 = vld [vmem:[%s2] sm:$0x1]
    %v52 = vlaneseq
    %v53 = vshrl.u32 %v52, 7
    %v54 = vsub.s32 0, %v53
    %v55 = vrot.slane %v50, %v54
    %v59 = vunpack.c.l.b16 %v44
    %v60 = vunpack.c.l.b16 %v45
    %v61 = vpack.c.b16 %v60, %v59
    %v66 = vunpack.c.l.b16 %v46
    %v67 = vunpack.c.l.b16 %v47
    %v68 = vunpack.c.l.b16 %v48
    %v69 = vunpack.c.l.b16 %v49
    %v70 = vpack.c.b16 %v67, %v66
    %v71 = vpack.c.b16 %v69, %v68
    %vm74 = vcmask 261120
    %v76 = vsel %vm74, %v61, 0
    %78 = vmatprep.subr.bf16.mxu0 0
    %79 = vmatpush1.bf16.msra.mxu0 %v70
    %80 = vmatprep.subr.bf16.mxu0 0
    %81 = vmatpush1.bf16.msra.mxu0 %v71
    %82 = vmatprep.subr.bf16.mxu0 0
    %83 = vmatpush1.bf16.msra.mxu0 0
    %84 = vmatprep.subr.bf16.mxu0 0
    %85 = vmatpush1.bf16.msra.mxu0 0
    %86 = vmatprep.subr.bf16.mxu0 0
    %87 = vmatpush1.bf16.msra.mxu0 0
    %88 = vmatprep.subr.bf16.mxu0 0
    %89 = vmatpush1.bf16.msra.mxu0 0
    %90 = vmatprep.subr.bf16.mxu0 0
    %91 = vmatpush1.bf16.msra.mxu0 0
    %92 = vmatprep.subr.bf16.mxu0 0
    %93 = vmatpush1.bf16.msra.mxu0 0
    %94 = vmatprep.subr.bf16.mxu0 0
    %95 = vmatpush1.bf16.msra.mxu0 0
    %96 = vmatprep.subr.bf16.mxu0 0
    %97 = vmatpush1.bf16.msra.mxu0 0
    %98 = vmatprep.subr.bf16.mxu0 0
    %99 = vmatpush1.bf16.msra.mxu0 0
    %100 = vmatprep.subr.bf16.mxu0 0
    %101 = vmatpush1.bf16.msra.mxu0 0
    %102 = vmatprep.subr.bf16.mxu0 0
    %103 = vmatpush1.bf16.msra.mxu0 0
    %104 = vmatprep.subr.bf16.mxu0 0
    %105 = vmatpush1.bf16.msra.mxu0 0
    %106 = vmatprep.subr.bf16.mxu0 0
    %107 = vmatpush1.bf16.msra.mxu0 0
    %108 = vmatprep.subr.bf16.mxu0 0
    %109 = vmatpush1.bf16.msra.mxu0 0
    %110 = vmatprep.mubr.bf16.mxu0 0
    %111 = vmatmul.mubr.bf16.gmra.mrb[0].mxu0 %v76
    %v112 = vpop.f32.mrb[0].mxu0
    %v113 = vadd.f32 %v55, %v112
    %v114 = vpop.f32.mrb[0].mxu0
    %v115 = vpop.f32.mrb[0].mxu0
    %v116 = vadd.f32 %v55, %v115
    %v117 = vpop.f32.mrb[0].mxu0
    %118 = vdwg.mxu0
    %v119 = vmax.f32 %v113, 0.0
    %v120 = vmax.f32 %v116, 0.0
    %121 = vst [vmem:[#allocation7] sm:$0xff] %v119
    %122 = vst [vmem:[#allocation7 + $0x8] sm:$0xff] %v120
    // Predicated region
    $region22: #{tpu_custom_call.1} parent=1 // pred_check
      _
    $region23: #{tpu_custom_call.1} parent=1 // pred_check_branch
      %124 = sbr.rel (0) target = $region25
    $region24: #{tpu_custom_call.1} parent=1 // pred_region
      %s126 = ssub.s32 256, 256
      %127 = vsyncadd [#allocation4], %s126
      %s128 = sshll.u32 [#allocation7], 4
      %s129 = int_to_ptr.vmem [resolvable:$true] %s128
      %134 = dma.vmem_to_hbm [thread:$0]  %s129, 256, %s3, [#allocation4], 128, 128, 8
    $region25: #{tpu_custom_call.1} parent=1 // pred_fallthru
      _
    // Predicated region
    $region26: #{tpu_custom_call.1} parent=1 // pred_check
      _
    $region27: #{tpu_custom_call.1} parent=1 // pred_check_branch
      %136 = sbr.rel (0) target = $region29
    $region28: #{tpu_custom_call.1} parent=1 // pred_region
      %137 = dma.done [#allocation4], 256
    $region29: #{tpu_custom_call.1} parent=1 // pred_fallthru
      _
    %138 = vsyncpa [#allocation3], 1
    %139 = vsyncpa [#allocation6], 1
    %140 = vsyncpa [#allocation4], 1

</llo_original>
